<compile_context>
chip_gen: v5e
topology: v5e:2x2
jax: 0.10.0
libtpu: 0.0.40
codegen_flags: <defaults>
</compile_context>

<pallas_src>
import jax
import jax.numpy as jnp
from jax.experimental import pallas as pl
from jax.experimental.pallas import tpu as pltpu

_MIB = 1024 * 1024
_FALLBACK_VMEM_CAPACITY = 64 * _MIB      # v7x physical VMEM (most conservative)
_OUT_TILE_BYTES_CAP = 4 * _MIB           # per-step output-tile byte cap
_MAX_TILE_ROWS = 1024                    # diminishing returns past ~512-1024
_DMA_MIN_ROW_BYTES = 512                 # below this, the VMEM copy path is fine


def _vmem_capacity_bytes():
    try:
        return int(pltpu.get_tpu_info().vmem_capacity_bytes)
    except Exception:
        return _FALLBACK_VMEM_CAPACITY


def _sublanes(itemsize):
    # Sublane packing: 8 rows/vreg for 32-bit, 16 for 16-bit, 32 for 8-bit.
    return max(8, 32 // max(int(itemsize), 1))


def _round_up(x, m):
    return -(-x // m) * m


def _batch_tile(batch, feats, in_itemsizes, dma_flags, total, out_itemsize,
                budget):
    """Pick the (static) batch tile TB."""
    sub = _sublanes(out_itemsize)
    if batch <= sub:
        return batch                                   # single full-dim block

    # Per-output-row pipelined VMEM footprint:
    #   double-buffered output tile + double-buffered VMEM-staged inputs
    # (direct-DMA inputs never touch VMEM), using per-input itemsizes.
    per_row = 2 * total * out_itemsize
    per_row += 2 * sum(w * isz for w, isz, d
                       in zip(feats, in_itemsizes, dma_flags) if not d)
    tb = budget // max(per_row, 1)

    # Cap per-step output bytes / rows to keep headroom (v7x has 64 MiB VMEM).
    cap_rows = max(sub, _OUT_TILE_BYTES_CAP // max(total * out_itemsize, 1))
    tb = min(tb, cap_rows, _MAX_TILE_ROWS)
    tb = max(sub, (tb // sub) * sub)

    if tb >= batch:
        # Whole batch fits one tile: still split into >= 2 grid steps so the
        # "parallel" axis gives v7x's second TensorCore work (harmless on
        # single-TC v5e/v6e).  For batch > sub this is always < batch.
        tb = _round_up(pl.cdiv(batch, 2), sub)
    return tb


def _make_kernel(feats, dma_flags, tb, batch, out_dtype):
    """Build a kernel body specialized on the static layout."""
    n_dma = sum(dma_flags)
    remainder = batch % tb

    # Static column offset of each modality inside the fused output row.
    offsets = []
    off = 0
    for w in feats:
        offsets.append(off)
        off += w

    def kernel(*refs):
        if n_dma:
            *in_refs, out_ref, sems = refs
        else:
            *in_refs, out_ref = refs
            sems = None

        # 1) Cast-and-copy the VMEM-staged modalities (full tile; any padded
        #    boundary rows are masked out of the output writeback).
        for r, w, o, is_dma in zip(in_refs, feats, offsets, dma_flags):
            if not is_dma:
                out_ref[:, o:o + w] = r[...].astype(out_ref.dtype)

        if n_dma == 0:
            return

        # 2) DMA the remaining modalities straight from HBM into their column
        #    range of the pipelined output tile (no input VMEM buffers).
        row_start = pl.program_id(0) * tb

        def issue_and_wait(rows):
            copies = []
            sem_idx = 0
            for r, w, o, is_dma in zip(in_refs, feats, offsets, dma_flags):
                if is_dma:
                    cp = pltpu.make_async_copy(
                        r.at[pl.ds(row_start, rows), :],
                        out_ref.at[:rows, o:o + w],
                        sems.at[sem_idx])
                    cp.start()
                    copies.append(cp)
                    sem_idx += 1
            for cp in copies:
                cp.wait()

        if remainder == 0:
            issue_and_wait(tb)
        else:
            is_last = pl.program_id(0) == pl.num_programs(0) - 1

            @pl.when(jnp.logical_not(is_last))
            def _():
                issue_and_wait(tb)

            @pl.when(is_last)
            def _():
                issue_and_wait(remainder)

    return kernel


def concat(modalities, *, vmem_budget_bytes=None):
    """Pallas implementation of Concat.forward(modalities).

    Each modality has shape [B, ...]; result is [B, sum(prod(trailing dims))].
    """
    mods = list(modalities)
    if not mods:
        raise ValueError("Concat needs at least one modality")
    B = mods[0].shape[0]

    # Layout glue: flatten from dim 1 (row-major == torch.flatten).
    flats = [jnp.reshape(m, (B, -1)) for m in mods]
    # NOTE: jnp.result_type promotion may differ from torch.cat in weak-type
    # corner cases (python scalars / int-to-float mixes); the copy is exact.
    out_dtype = jnp.result_type(*[f.dtype for f in flats])
    out_itemsize = jnp.dtype(out_dtype).itemsize
    feats = [f.shape[1] for f in flats]
    in_itemsizes = [jnp.dtype(f.dtype).itemsize for f in flats]
    total = sum(feats)

    # Route each modality: direct HBM -> output-tile DMA when no cast is
    # needed and the row is wide enough for an efficient strided DMA;
    # otherwise stage through an auto-pipelined VMEM tile with a fused cast.
    dma_flags = [
        (f.dtype == out_dtype) and (w * isz >= _DMA_MIN_ROW_BYTES)
        for f, w, isz in zip(flats, feats, in_itemsizes)
    ]
    n_dma = sum(dma_flags)

    capacity = _vmem_capacity_bytes()
    budget = (vmem_budget_bytes if vmem_budget_bytes is not None
              else capacity // 4)
    tb = _batch_tile(B, feats, in_itemsizes, dma_flags, total, out_itemsize,
                     budget)
    grid = (pl.cdiv(B, tb),)

    in_specs = []
    for w, is_dma in zip(feats, dma_flags):
        if is_dma:
            in_specs.append(pl.BlockSpec(memory_space=pl.ANY))
        else:
            in_specs.append(pl.BlockSpec((tb, w), lambda i: (i, 0)))
    out_specs = pl.BlockSpec((tb, total), lambda i: (i, 0))

    scratch_shapes = []
    if n_dma:
        scratch_shapes.append(pltpu.SemaphoreType.DMA((n_dma,)))

    # Actual per-step footprint -> scoped VMEM limit (+ headroom), so a large
    # `total` can't silently exceed the default scoped limit (16 MiB on v5e).
    footprint = 2 * tb * total * out_itemsize
    footprint += 2 * tb * sum(w * isz for w, isz, d
                              in zip(feats, in_itemsizes, dma_flags) if not d)
    vmem_limit = int(min(capacity, max(32 * _MIB, 2 * footprint + 2 * _MIB)))

    read_bytes = sum(B * w * isz for w, isz in zip(feats, in_itemsizes))
    write_bytes = B * total * out_itemsize
    cost = pl.CostEstimate(flops=0, transcendentals=0,
                           bytes_accessed=read_bytes + write_bytes)

    kernel = _make_kernel(tuple(feats), tuple(dma_flags), tb, B, out_dtype)

    return pl.pallas_call(
        kernel,
        out_shape=jax.ShapeDtypeStruct((B, total), out_dtype),
        grid=grid,
        in_specs=in_specs,
        out_specs=out_specs,
        scratch_shapes=scratch_shapes,
        compiler_params=pltpu.CompilerParams(
            dimension_semantics=("parallel",),
            vmem_limit_bytes=vmem_limit),
        cost_estimate=cost,
    )(*flats)


if __name__ == "__main__":
    key = jax.random.PRNGKey(0)
    k1, k2, k3 = jax.random.split(key, 3)

    # Late-fusion style inputs: NCHW image features, NLC sequence features,
    # and a flat feature vector.  All f32 -> every modality takes the direct
    # HBM -> output-tile DMA path; single full-dim batch block.
    B = 2
    x_img = jax.random.normal(k1, (B, 4, 16, 16), dtype=jnp.float32)  # -> 1024
    x_seq = jax.random.normal(k2, (B, 8, 16), dtype=jnp.float32)      # -> 128
    x_vec = jax.random.normal(k3, (B, 256), dtype=jnp.float32)        # -> 256

    out = jax.block_until_ready(concat([x_img, x_seq, x_vec]))
    ref = jnp.concatenate(
        [jnp.reshape(m, (B, -1)) for m in (x_img, x_seq, x_vec)], axis=1)
    assert out.shape == (B, 4 * 16 * 16 + 8 * 16 + 256)
    assert jnp.array_equal(out, ref)

    # Second check: bigger batch, tiny VMEM budget and a bf16 modality, so we
    # exercise (a) the multi-step pipelined batch grid, (b) the boundary
    # (remainder) tile, and (c) the mixed-dtype VMEM cast path alongside the
    # direct-DMA path.
    B2 = 20
    k4, k5, k6 = jax.random.split(jax.random.PRNGKey(0), 3)
    y_img = jax.random.normal(k4, (B2, 4, 16, 16), dtype=jnp.float32)
    y_seq = jax.random.normal(k5, (B2, 8, 16), dtype=jnp.bfloat16)
    y_vec = jax.random.normal(k6, (B2, 256), dtype=jnp.float32)
    out2 = jax.block_until_ready(
        concat([y_img, y_seq, y_vec], vmem_budget_bytes=256 * 1024))
    ref2 = jnp.concatenate(
        [jnp.reshape(m, (B2, -1)) for m in (y_img, y_seq, y_vec)], axis=1)
    assert out2.dtype == jnp.float32
    assert jnp.array_equal(out2, ref2)

    print("KERNEL_OK")
</pallas_src>

<mosaic_0001>
module attributes {stable_mosaic.version = 11 : i64} {
  func.func @kernel(%arg0: i32, %arg1: memref<2x1024xf32, #tpu.memory_space<any>>, %arg2: memref<2x128xf32, #tpu.memory_space<any>>, %arg3: memref<2x256xf32, #tpu.memory_space<any>>, %arg4: memref<2x1408xf32, #tpu.memory_space<vmem>>, %arg5: memref<3x!tpu.dma_semaphore, #tpu.memory_space<semaphore_mem>>) attributes {dimension_semantics = [#tpu.dimension_semantics<parallel>], iteration_bounds = array<i64: 1>, scalar_prefetch = 0 : i64, scratch_operands = 1 : i64, tpu.core_type = #tpu.core_type<tc>, window_params = [{}, {}, {}, {transform_indices = @transform_3, window_bounds = array<i64: 2, 1408>}]} {
    %c2_i32 = arith.constant 2 : i32
    %0 = arith.muli %arg0, %c2_i32 : i32
    %c0_i32 = arith.constant 0 : i32
    %c0_i32_0 = arith.constant 0 : i32
    %1 = tpu.memref_slice %arg1[%0, %c0_i32_0] : memref<2x1024xf32, #tpu.memory_space<any>> -> memref<2x1024xf32, #tpu.memory_space<any>>
    %c0_i32_1 = arith.constant 0 : i32
    %c0_i32_2 = arith.constant 0 : i32
    %2 = tpu.memref_slice %arg4[%c0_i32_1, %c0_i32_2] : memref<2x1408xf32, #tpu.memory_space<vmem>> -> memref<2x1024xf32, #tpu.memory_space<vmem>>
    %3 = tpu.memref_slice %arg5[%c0_i32] : memref<3x!tpu.dma_semaphore, #tpu.memory_space<semaphore_mem>> -> memref<1x!tpu.dma_semaphore, #tpu.memory_space<semaphore_mem>>
    %4 = tpu.memref_squeeze %3 : memref<1x!tpu.dma_semaphore, #tpu.memory_space<semaphore_mem>> -> memref<!tpu.dma_semaphore, #tpu.memory_space<semaphore_mem>>
    tpu.enqueue_dma source(%1 : memref<2x1024xf32, #tpu.memory_space<any>>) target(%2 : memref<2x1024xf32, #tpu.memory_space<vmem>>) target_semaphore(%4 : memref<!tpu.dma_semaphore, #tpu.memory_space<semaphore_mem>>)
    %c1_i32 = arith.constant 1 : i32
    %c0_i32_3 = arith.constant 0 : i32
    %5 = tpu.memref_slice %arg2[%0, %c0_i32_3] : memref<2x128xf32, #tpu.memory_space<any>> -> memref<2x128xf32, #tpu.memory_space<any>>
    %c0_i32_4 = arith.constant 0 : i32
    %c1024_i32 = arith.constant 1024 : i32
    %6 = tpu.memref_slice %arg4[%c0_i32_4, %c1024_i32] : memref<2x1408xf32, #tpu.memory_space<vmem>> -> memref<2x128xf32, #tpu.memory_space<vmem>>
    %7 = tpu.memref_slice %arg5[%c1_i32] : memref<3x!tpu.dma_semaphore, #tpu.memory_space<semaphore_mem>> -> memref<1x!tpu.dma_semaphore, #tpu.memory_space<semaphore_mem>>
    %8 = tpu.memref_squeeze %7 : memref<1x!tpu.dma_semaphore, #tpu.memory_space<semaphore_mem>> -> memref<!tpu.dma_semaphore, #tpu.memory_space<semaphore_mem>>
    tpu.enqueue_dma source(%5 : memref<2x128xf32, #tpu.memory_space<any>>) target(%6 : memref<2x128xf32, #tpu.memory_space<vmem>>) target_semaphore(%8 : memref<!tpu.dma_semaphore, #tpu.memory_space<semaphore_mem>>)
    %c2_i32_5 = arith.constant 2 : i32
    %c0_i32_6 = arith.constant 0 : i32
    %9 = tpu.memref_slice %arg3[%0, %c0_i32_6] : memref<2x256xf32, #tpu.memory_space<any>> -> memref<2x256xf32, #tpu.memory_space<any>>
    %c0_i32_7 = arith.constant 0 : i32
    %c1152_i32 = arith.constant 1152 : i32
    %10 = tpu.memref_slice %arg4[%c0_i32_7, %c1152_i32] : memref<2x1408xf32, #tpu.memory_space<vmem>> -> memref<2x256xf32, #tpu.memory_space<vmem>>
    %11 = tpu.memref_slice %arg5[%c2_i32_5] : memref<3x!tpu.dma_semaphore, #tpu.memory_space<semaphore_mem>> -> memref<1x!tpu.dma_semaphore, #tpu.memory_space<semaphore_mem>>
    %12 = tpu.memref_squeeze %11 : memref<1x!tpu.dma_semaphore, #tpu.memory_space<semaphore_mem>> -> memref<!tpu.dma_semaphore, #tpu.memory_space<semaphore_mem>>
    tpu.enqueue_dma source(%9 : memref<2x256xf32, #tpu.memory_space<any>>) target(%10 : memref<2x256xf32, #tpu.memory_space<vmem>>) target_semaphore(%12 : memref<!tpu.dma_semaphore, #tpu.memory_space<semaphore_mem>>)
    %c0_i32_8 = arith.constant 0 : i32
    %c0_i32_9 = arith.constant 0 : i32
    %13 = tpu.memref_slice %arg1[%0, %c0_i32_9] : memref<2x1024xf32, #tpu.memory_space<any>> -> memref<2x1024xf32, #tpu.memory_space<any>>
    %c0_i32_10 = arith.constant 0 : i32
    %c0_i32_11 = arith.constant 0 : i32
    %14 = tpu.memref_slice %arg4[%c0_i32_10, %c0_i32_11] : memref<2x1408xf32, #tpu.memory_space<vmem>> -> memref<2x1024xf32, #tpu.memory_space<vmem>>
    %15 = tpu.memref_slice %arg5[%c0_i32_8] : memref<3x!tpu.dma_semaphore, #tpu.memory_space<semaphore_mem>> -> memref<1x!tpu.dma_semaphore, #tpu.memory_space<semaphore_mem>>
    %16 = tpu.memref_squeeze %15 : memref<1x!tpu.dma_semaphore, #tpu.memory_space<semaphore_mem>> -> memref<!tpu.dma_semaphore, #tpu.memory_space<semaphore_mem>>
    tpu.wait_dma2 semaphore(%16 : memref<!tpu.dma_semaphore, #tpu.memory_space<semaphore_mem>>) src(%13 : memref<2x1024xf32, #tpu.memory_space<any>>) dst(%14 : memref<2x1024xf32, #tpu.memory_space<vmem>>)
    %c1_i32_12 = arith.constant 1 : i32
    %c0_i32_13 = arith.constant 0 : i32
    %17 = tpu.memref_slice %arg2[%0, %c0_i32_13] : memref<2x128xf32, #tpu.memory_space<any>> -> memref<2x128xf32, #tpu.memory_space<any>>
    %c0_i32_14 = arith.constant 0 : i32
    %c1024_i32_15 = arith.constant 1024 : i32
    %18 = tpu.memref_slice %arg4[%c0_i32_14, %c1024_i32_15] : memref<2x1408xf32, #tpu.memory_space<vmem>> -> memref<2x128xf32, #tpu.memory_space<vmem>>
    %19 = tpu.memref_slice %arg5[%c1_i32_12] : memref<3x!tpu.dma_semaphore, #tpu.memory_space<semaphore_mem>> -> memref<1x!tpu.dma_semaphore, #tpu.memory_space<semaphore_mem>>
    %20 = tpu.memref_squeeze %19 : memref<1x!tpu.dma_semaphore, #tpu.memory_space<semaphore_mem>> -> memref<!tpu.dma_semaphore, #tpu.memory_space<semaphore_mem>>
    tpu.wait_dma2 semaphore(%20 : memref<!tpu.dma_semaphore, #tpu.memory_space<semaphore_mem>>) src(%17 : memref<2x128xf32, #tpu.memory_space<any>>) dst(%18 : memref<2x128xf32, #tpu.memory_space<vmem>>)
    %c2_i32_16 = arith.constant 2 : i32
    %c0_i32_17 = arith.constant 0 : i32
    %21 = tpu.memref_slice %arg3[%0, %c0_i32_17] : memref<2x256xf32, #tpu.memory_space<any>> -> memref<2x256xf32, #tpu.memory_space<any>>
    %c0_i32_18 = arith.constant 0 : i32
    %c1152_i32_19 = arith.constant 1152 : i32
    %22 = tpu.memref_slice %arg4[%c0_i32_18, %c1152_i32_19] : memref<2x1408xf32, #tpu.memory_space<vmem>> -> memref<2x256xf32, #tpu.memory_space<vmem>>
    %23 = tpu.memref_slice %arg5[%c2_i32_16] : memref<3x!tpu.dma_semaphore, #tpu.memory_space<semaphore_mem>> -> memref<1x!tpu.dma_semaphore, #tpu.memory_space<semaphore_mem>>
    %24 = tpu.memref_squeeze %23 : memref<1x!tpu.dma_semaphore, #tpu.memory_space<semaphore_mem>> -> memref<!tpu.dma_semaphore, #tpu.memory_space<semaphore_mem>>
    tpu.wait_dma2 semaphore(%24 : memref<!tpu.dma_semaphore, #tpu.memory_space<semaphore_mem>>) src(%21 : memref<2x256xf32, #tpu.memory_space<any>>) dst(%22 : memref<2x256xf32, #tpu.memory_space<vmem>>)
    return
  }
  func.func @transform_3(%arg0: i32) -> (i32, i32) {
    %c0_i32 = arith.constant 0 : i32
    %c0_i32_0 = arith.constant 0 : i32
    return %arg0, %c0_i32 : i32, i32
  }
}

</mosaic_0001>

<llo_original>
// kernel: tpu_custom_call.1
$region0: #{tpu_custom_call.1}
  #allocation0 [shape = 'u32[]', space=smem, size = 0x4, offset = 0x4, fixed_abs, tag = 'smem constant byte address 0x4 - core index']
  #allocation1 [shape = 'u32[72,128]{1,0:T(1,128)}', space=vmem, size = 0x9000, scoped, tag = 'internal scratch']
  #allocation2 [shape = 's32[3]{0}', space=sflag, size = 0xc, scoped, tag = 'scratch operand']
  #allocation5 [shape = 's32[]', space=sflag, size = 0x4, offset = 0, fixed_abs, tag = 'sflag constant byte address 0x0 - dummy sync flag']
  #allocation6 [shape = 's32[]', space=sflag, size = 0x4, offset = 0, fixed_abs, tag = 'sflag constant byte address 0x0 - dummy sync flag']
  #allocation7 [shape = 'u32[]', space=smem, size = 0x4, offset = 0x44, fixed_abs, tag = 'smem constant byte address 0x44 - assertion arg 0']
  #allocation8 [shape = 'u32[]', space=smem, size = 0x4, offset = 0x48, fixed_abs, tag = 'smem constant byte address 0x48 - assertion arg 1']
  #allocation9 [shape = 's32[]', space=sflag, size = 0x4, offset = 0, fixed_abs, tag = 'sflag constant byte address 0x0 - dummy sync flag']
  #allocation10 [shape = 's32[]', space=sflag, size = 0x4, offset = 0, fixed_abs, tag = 'sflag constant byte address 0x0 - dummy sync flag']
  #allocation11 [shape = 's32[]', space=sflag, size = 0x4, offset = 0, fixed_abs, tag = 'sflag constant byte address 0x0 - dummy sync flag']
  #allocation12 [shape = 's32[]', space=sflag, size = 0x4, offset = 0, fixed_abs, tag = 'sflag constant byte address 0x0 - dummy sync flag']
  %s0 = inlined_call_operand.hbm [shape: f32[2,1024], index: 0, kind: input, shape index: {}]
  %s1 = inlined_call_operand.hbm [shape: f32[2,128], index: 1, kind: input, shape index: {}]
  %s2 = inlined_call_operand.hbm [shape: f32[2,256], index: 2, kind: input, shape index: {}]
  %s3 = inlined_call_operand.hbm [shape: f32[2,1408], index: 3, kind: output, shape index: {}]
  %s4 = sld [smem:[#allocation0]]
  $region22: #{tpu_custom_call.1} parent=0
    _
  %s6 = ssub.s32 1, %s4
  %s7 = scalar_select 0, %s6, %s4
  $region1: #{tpu_custom_call.1} parent=0
    #allocation3 [shape = 'u8[11264]{0}', space=vmem, size = 0x2c00, scoped, tag = 'output window, operand 0, single buffered']
    #allocation4 [shape = 's32[1]{0}', space=sflag, size = 0x4, scoped, tag = 'scoped memory for tpu_custom_call.1']
    %8 = vsyncpa [#allocation4], 0
    %s9 = smul.u32 0, 2
    %s10 = sshra.s32 %s9, 1
    %s11 = sand.u32 %s9, 1
    %s12 = smul.u32 %s10, 8
    %s13 = smul.addr %s12, 2
    %s14 = scalar_lea.hbm %s0, %s13
    // Predicated region
    $region2: #{tpu_custom_call.1} parent=1 // pred_check
      _
    $region3: #{tpu_custom_call.1} parent=1 // pred_check_branch
      %16 = sbr.rel target = $region5
    $region4: #{tpu_custom_call.1} parent=1 // pred_region
      %17 = sst [smem:[#allocation7]] [#allocation6]
      %18 = sst [smem:[#allocation8]] [#allocation5]
    $region5: #{tpu_custom_call.1} parent=1 // pred_fallthru
      _
    %20 = shalt.err (0)
    %s22 = sshll.u32 %s14, 4
    %s23 = int_to_ptr.hbm [resolvable:$true] %s22
    %s24 = sshll.u32 [#allocation3], 4
    %s25 = int_to_ptr.vmem [resolvable:$true] %s24
    %27 = dma.hbm_to_vmem [thread:$0]  %s23, 256, %s25, [#allocation2]
    %s28 = scalar_lea.hbm %s1, %s9
    %s29 = scalar_lea.vmem [#allocation3], 16
    %s30 = scalar_lea.sflag [#allocation2], 1
    // Predicated region
    $region6: #{tpu_custom_call.1} parent=1 // pred_check
      _
    $region7: #{tpu_custom_call.1} parent=1 // pred_check_branch
      %32 = sbr.rel target = $region9
    $region8: #{tpu_custom_call.1} parent=1 // pred_region
      %33 = sst [smem:[#allocation7]] [#allocation10]
      %34 = sst [smem:[#allocation8]] [#allocation9]
    $region9: #{tpu_custom_call.1} parent=1 // pred_fallthru
      _
    %36 = shalt.err (0)
    %s38 = sshll.u32 %s28, 4
    %s39 = int_to_ptr.hbm [resolvable:$true] %s38
    %s40 = sshll.u32 %s29, 4
    %s41 = int_to_ptr.vmem [resolvable:$true] %s40
    %43 = dma.hbm_to_vmem [thread:$0]  %s39, 32, %s41, %s30
    %s44 = smul.u32 %s10, 2
    %s45 = smul.addr %s44, 2
    %s46 = scalar_lea.hbm %s2, %s45
    %s47 = scalar_lea.vmem [#allocation3], 18
    %s48 = scalar_lea.sflag [#allocation2], 2
    // Predicated region
    $region10: #{tpu_custom_call.1} parent=1 // pred_check
      _
    $region11: #{tpu_custom_call.1} parent=1 // pred_check_branch
      %50 = sbr.rel target = $region13
    $region12: #{tpu_custom_call.1} parent=1 // pred_region
      %51 = sst [smem:[#allocation7]] [#allocation12]
      %52 = sst [smem:[#allocation8]] [#allocation11]
    $region13: #{tpu_custom_call.1} parent=1 // pred_fallthru
      _
    %54 = shalt.err (0)
    %s56 = sshll.u32 %s46, 4
    %s57 = int_to_ptr.hbm [resolvable:$true] %s56
    %s58 = sshll.u32 %s47, 4
    %s59 = int_to_ptr.vmem [resolvable:$true] %s58
    %61 = dma.hbm_to_vmem [thread:$0]  %s57, 64, %s59, %s48
    %s62 = smul.u32 2, 1
    %s63 = smul.u32 %s62, 8
    %s64 = sshll.u32 %s63, 4
    %65 = dma.done [#allocation2], %s64
    %s66 = smul.u32 %s62, 1
    %s67 = sshll.u32 %s66, 4
    %68 = dma.done %s30, %s67
    %s69 = smul.u32 %s62, 2
    %s70 = sshll.u32 %s69, 4
    %71 = dma.done %s48, %s70
    // Predicated region
    $region14: #{tpu_custom_call.1} parent=1 // pred_check
      _
    $region15: #{tpu_custom_call.1} parent=1 // pred_check_branch
      %73 = sbr.rel (0) target = $region17
    $region16: #{tpu_custom_call.1} parent=1 // pred_region
      %75 = vsyncadd [#allocation4], 0
      %s77 = sshll.u32 [#allocation3], 4
      %s78 = int_to_ptr.vmem [resolvable:$true] %s77
      %s79 = sshll.u32 %s3, 4
      %s80 = int_to_ptr.hbm [resolvable:$true] %s79
      %82 = dma.vmem_to_hbm [thread:$0]  %s78, 352, %s80, [#allocation4]
    $region17: #{tpu_custom_call.1} parent=1 // pred_fallthru
      _
    // Predicated region
    $region18: #{tpu_custom_call.1} parent=1 // pred_check
      _
    $region19: #{tpu_custom_call.1} parent=1 // pred_check_branch
      %84 = sbr.rel (0) target = $region21
    $region20: #{tpu_custom_call.1} parent=1 // pred_region
      %86 = dma.done [#allocation4], 352
    $region21: #{tpu_custom_call.1} parent=1 // pred_fallthru
      _
    %87 = vsyncpa [#allocation4], 1
  %88 = vsyncmov [#allocation2]
  %s89 = vpop.sfrf %88
  %p90 = scmp.eq.s32.totalorder %s89, 0
  %p91 = pneg %p90
  %93 = shalt.err (%p91)
  %s94 = scalar_lea.sflag [#allocation2], 1
  %95 = vsyncmov %s94
  %s96 = vpop.sfrf %95
  %p97 = scmp.eq.s32.totalorder %s96, 0
  %p98 = pneg %p97
  %100 = shalt.err (%p98)
  %s101 = scalar_lea.sflag [#allocation2], 2
  %102 = vsyncmov %s101
  %s103 = vpop.sfrf %102
  %p104 = scmp.eq.s32.totalorder %s103, 0
  %p105 = pneg %p104
  %107 = shalt.err (%p105)

</llo_original>
